<compile_context>
chip_gen: v5e
topology: v5e:2x2
jax: 0.10.0
libtpu: 0.0.40
codegen_flags: <defaults>
</compile_context>

<pallas_src>
import functools

import jax
import jax.numpy as jnp
from jax.experimental import pallas as pl
from jax.experimental.pallas import tpu as pltpu

LN_EPS = 1e-5
L1_EPS = 1e-12  # F.normalize clamp_min eps


def _round_up(n, m):
    return ((n + m - 1) // m) * m


def _layernorm(x, gamma, beta):
    """Plain LayerNorm over the last dim (used by the pure-JAX references)."""
    mu = jnp.mean(x, axis=-1, keepdims=True)
    var = jnp.mean((x - mu) ** 2, axis=-1, keepdims=True)
    return (x - mu) * jax.lax.rsqrt(var + LN_EPS) * gamma + beta


def _ln_masked(x, gamma, beta, mask, inv_d):
    """LayerNorm over the true D lanes of a zero-padded (rows, Dp) slab.

    Padded lanes of `x` are exactly zero, so the plain sum gives the true sum; the mask
    zeroes (x - mu) in padded lanes so the variance is exact too.  gamma/beta are
    zero-padded, so padded output lanes come out as exactly 0.
    """
    mu = jnp.sum(x, axis=-1, keepdims=True) * inv_d
    diff = (x - mu) * mask
    var = jnp.sum(diff * diff, axis=-1, keepdims=True) * inv_d
    return diff * jax.lax.rsqrt(var + LN_EPS) * gamma + beta


def encoder_kernel(x_ref, A_ref,
                   wv_ref, bv_ref, wo_ref, bo_ref,
                   g1_ref, be1_ref,
                   w1_ref, b1_ref, w2_ref, b2_ref,
                   g2_ref, be2_ref,
                   out_ref, *, bb, Lp, D, Dp, Fp, ffn_chunk):
    rows = bb * Lp
    inv_d = jnp.float32(1.0 / D)
    lane = jax.lax.broadcasted_iota(jnp.int32, (1, Dp), 1)
    mask = (lane < D).astype(jnp.float32)          # 1 for real feature lanes, 0 for padding

    # Activations arrive in bf16 (half the DMA).  Upcast once for the f32 residual/LN path.
    # Lp % 8 == 0, so the (bb, Lp, Dp) -> (rows, Dp) reshape is tile-aligned (free).
    x2 = x_ref[...].astype(jnp.float32).reshape(rows, Dp)
    x2_bf = x2.astype(jnp.bfloat16)                # exact round-trip of the bf16 input

    # values = v_proj(x): one (rows, Dp) @ (Dp, Dp) MXU call, f32 accumulation.
    values = jnp.dot(x2_bf, wv_ref[...], preferred_element_type=jnp.float32) + bv_ref[...]

    # Token mixing as ONE full-width matmul.  A_ref holds kron(I_bb, A) (block-diagonal,
    # built once in the wrapper, bf16): M = K = rows, N = Dp, so a single MXU pass replaces
    # bb tiny (L,L)@(L,Dp) slivers and no copy of A is broadcast per step.  The extra MACs
    # vs. the ideal bb*L^2*Dp are rows*(rows-L)*Dp, bounded by the wrapper's rows cap; for
    # very large L/rows switch to a values relayout + (L, bb*Dp) matmul instead.
    mixed = jnp.dot(A_ref[...], values.astype(jnp.bfloat16),
                    preferred_element_type=jnp.float32)

    new_x = jnp.dot(mixed.astype(jnp.bfloat16), wo_ref[...],
                    preferred_element_type=jnp.float32) + bo_ref[...]

    # residual + LayerNorm1 (f32, masked over the real D lanes)
    x1 = _ln_masked(x2 + new_x, g1_ref[...], be1_ref[...], mask, inv_d)
    x1_bf = x1.astype(jnp.bfloat16)

    # FFN (pointwise conv1 -> relu -> pointwise conv2), chunked over the d_ff axis so the
    # f32 intermediate never exceeds rows x ffn_chunk (v7x 64 MiB VMEM safety) while each
    # MXU N-pass stays full width.  Static trip count -> fully unrolled.
    y = None
    for c0 in range(0, Fp, ffn_chunk):
        h = jnp.dot(x1_bf, w1_ref[:, c0:c0 + ffn_chunk],
                    preferred_element_type=jnp.float32) + b1_ref[:, c0:c0 + ffn_chunk]
        h = jnp.maximum(h, 0.0)
        part = jnp.dot(h.astype(jnp.bfloat16), w2_ref[c0:c0 + ffn_chunk, :],
                       preferred_element_type=jnp.float32)
        y = part if y is None else y + part
    y = y + b2_ref[...]

    # residual + LayerNorm2 (f32); write back bf16 (halves output HBM traffic, lane-dense).
    out = _ln_masked(x1 + y, g2_ref[...], be2_ref[...], mask, inv_d)
    out_ref[...] = out.reshape(bb, Lp, Dp).astype(out_ref.dtype)


def _default_target_rows():
    # Fill the MXU M dim: >=128 rows on v5e (4x128^2 MXU), >=256 on v6e/v7x (2x256^2).
    try:
        kind = jax.devices()[0].device_kind.lower()
    except Exception:
        kind = ""
    return 128 if "v5" in kind else 256


def _vmem_capacity_bytes():
    # Conservative default = v7x's 64 MiB per-TensorCore VMEM.
    try:
        return int(pltpu.get_tpu_info().vmem_capacity_bytes)
    except Exception:
        return 64 * 1024 * 1024


def _est_vmem_bytes(bb, Lp, Dp, Fp, ffn_chunk):
    """Rough per-core VMEM footprint: double-buffered bf16 act in/out blocks + resident
    weights / mixing matrix (x2 for default double buffering) + f32 kernel temporaries."""
    rows = bb * Lp
    act_io = 2 * rows * Dp * (2 + 2)                       # bf16 in + bf16 out blocks
    consts = 2 * (rows * rows * 2                          # kron(I_bb, A) bf16
                  + (2 * Dp * Dp + 2 * Dp * Fp) * 2        # wv, wo, w1, w2 bf16
                  + 10 * max(Dp, Fp) * 4)                  # biases / LayerNorm params f32
    inter = rows * (7 * Dp + 2 * ffn_chunk) * 4            # f32 temporaries in the body
    return act_io + consts + inter


def linear_encoder_pre_post_lin(x, params, *, target_rows=None, trim=True):
    """x: (B, L, D) float32. params: dict of f32 module weights laid out as (in, out).

    Returns the EncoderLayer output in bf16 (shape (B, L, D) if trim=True; otherwise the
    padded (B_pad, Lp, Dp) kernel layout, which production consumers should take directly
    to avoid an extra XLA slice pass over the output).
    """
    B, L, D = x.shape
    F = params["w1"].shape[1]

    Lp = _round_up(L, 8)           # keep (bb, Lp, Dp) <-> (rows, Dp) reshapes tile-aligned
    Dp = _round_up(D, 128)         # lane-dense feature dim
    FFN_CHUNK = 512                # multiple of 256 (v6e/v7x) and of 128 (v5e)
    Fp0 = _round_up(F, 128)
    n_ffn_chunks = max(1, -(-Fp0 // FFN_CHUNK))
    ffn_chunk = _round_up(-(-Fp0 // n_ffn_chunks), 128)
    Fp = n_ffn_chunks * ffn_chunk

    # --- hoisted, batch-invariant preprocessing (done once, not once per grid step) ---
    A = jnp.logaddexp(params["A"][0], 0.0)                            # softplus (>= 0)
    A = A / jnp.maximum(jnp.sum(A, axis=-1, keepdims=True), L1_EPS)   # L1 normalize, no abs
    A = jnp.pad(A, ((0, Lp - L), (0, Lp - L)))                        # zero rows/cols for padded tokens

    def pad2(w, r, c):
        return jnp.pad(w, ((0, r - w.shape[0]), (0, c - w.shape[1])))

    # zero-pad feature dims to lane-dense multiples of 128; weights in bf16 (half DMA)
    wv = pad2(params["wv"], Dp, Dp).astype(jnp.bfloat16)
    wo = pad2(params["wo"], Dp, Dp).astype(jnp.bfloat16)
    w1 = pad2(params["w1"], Dp, Fp).astype(jnp.bfloat16)
    w2 = pad2(params["w2"], Fp, Dp).astype(jnp.bfloat16)
    bv = pad2(params["bv"], 1, Dp)
    bo = pad2(params["bo"], 1, Dp)
    b1 = pad2(params["b1"], 1, Fp)
    b2 = pad2(params["b2"], 1, Dp)
    g1 = pad2(params["g1"], 1, Dp)
    be1 = pad2(params["be1"], 1, Dp)
    g2 = pad2(params["g2"], 1, Dp)
    be2 = pad2(params["be2"], 1, Dp)

    # --- generation-aware block sizing: keep bb = B (one grid step) unless there is enough
    # work for >=2 steps of ~target_rows rows each; cap by an explicit VMEM estimate. ---
    if target_rows is None:
        target_rows = _default_target_rows()
    if B * Lp <= target_rows:
        bb = B                                   # one full-size grid step, no forced split
    else:
        bb = max(1, target_rows // Lp)           # each grid step still has ~target_rows rows
    vmem_cap = _vmem_capacity_bytes()
    while bb > 1 and _est_vmem_bytes(bb, Lp, Dp, Fp, ffn_chunk) > int(0.6 * vmem_cap):
        bb -= 1

    groups = -(-B // bb)
    B_pad = groups * bb
    rows = bb * Lp

    # Block-diagonal mixing matrix (one full-width MXU matmul in the kernel); bf16.
    bigA = jnp.kron(jnp.eye(bb, dtype=jnp.float32), A).astype(jnp.bfloat16)

    # Activations DMA'd in bf16 (halves the dominant per-step input stream).
    xp = jnp.pad(x, ((0, B_pad - B), (0, Lp - L), (0, Dp - D))).astype(jnp.bfloat16)

    kernel = functools.partial(encoder_kernel, bb=bb, Lp=Lp, D=D, Dp=Dp, Fp=Fp,
                               ffn_chunk=ffn_chunk)

    def const_spec(arr):
        # grid-invariant block (weights / mixing matrix / biases): constant index_map, so
        # the pipeline keeps the block resident instead of re-fetching it per step.
        return pl.BlockSpec(arr.shape, lambda g, _nd=arr.ndim: (0,) * _nd)

    in_specs = [
        pl.BlockSpec((bb, Lp, Dp), lambda g: (g, 0, 0)),   # activations
        const_spec(bigA),
        const_spec(wv), const_spec(bv), const_spec(wo), const_spec(bo),
        const_spec(g1), const_spec(be1),
        const_spec(w1), const_spec(b1), const_spec(w2), const_spec(b2),
        const_spec(g2), const_spec(be2),
    ]

    est = _est_vmem_bytes(bb, Lp, Dp, Fp, ffn_chunk)
    vmem_limit = int(min(0.75 * vmem_cap, max(32 * 1024 * 1024, 4 * est)))

    out = pl.pallas_call(
        kernel,
        out_shape=jax.ShapeDtypeStruct((B_pad, Lp, Dp), jnp.bfloat16),
        grid_spec=pltpu.PrefetchScalarGridSpec(
            num_scalar_prefetch=0,
            grid=(groups,),
            in_specs=in_specs,
            out_specs=pl.BlockSpec((bb, Lp, Dp), lambda g: (g, 0, 0)),
        ),
        compiler_params=pltpu.CompilerParams(
            # groups > 1 only happens when every step already has ~target_rows rows, so
            # megacore sharding on v7x only kicks in with full-sized blocks; on v5e/v6e
            # (1 TC) the single-step / few-step grid is just a cheap loop.
            dimension_semantics=("parallel",),
            vmem_limit_bytes=vmem_limit),
    )(xp, bigA, wv, bv, wo, bo, g1, be1, w1, b1, w2, b2, g2, be2)

    if trim:
        # NOTE: production consumers should take the padded bf16 layout (trim=False) and
        # fuse the slice downstream instead of paying this extra pass over the output.
        return out[:B, :L, :D]
    return out


def make_params(key, d_model, d_ff, token_num):
    ks = jax.random.split(key, 8)
    scale = 0.05
    # Linear weights stored as (in, out) so the kernel does x @ W.
    wv = jax.random.normal(ks[0], (d_model, d_model), jnp.float32) * scale
    bv = jax.random.normal(ks[1], (1, d_model), jnp.float32) * scale
    wo = jax.random.normal(ks[2], (d_model, d_model), jnp.float32) * scale
    bo = jax.random.normal(ks[3], (1, d_model), jnp.float32) * scale
    # weight_mat = eye(token_num) + randn(token_num, token_num)
    A = (jnp.eye(token_num, dtype=jnp.float32)
         + jax.random.normal(ks[4], (token_num, token_num), jnp.float32))[None, :, :]
    # conv1d kernel_size=1 weights == Linear weights; stored as (in, out).
    w1 = jax.random.normal(ks[5], (d_model, d_ff), jnp.float32) * scale
    b1 = jax.random.normal(ks[6], (1, d_ff), jnp.float32) * scale
    w2 = jax.random.normal(ks[7], (d_ff, d_model), jnp.float32) * scale
    b2 = jnp.zeros((1, d_model), jnp.float32)
    g1 = jnp.ones((1, d_model), jnp.float32)
    be1 = jnp.zeros((1, d_model), jnp.float32)
    g2 = jnp.ones((1, d_model), jnp.float32)
    be2 = jnp.zeros((1, d_model), jnp.float32)
    return dict(A=A, wv=wv, bv=bv, wo=wo, bo=bo,
                g1=g1, be1=be1, w1=w1, b1=b1, w2=w2, b2=b2, g2=g2, be2=be2)


def reference_forward_f32(x, p):
    """Pure-f32 JAX reference mirroring the PyTorch module (dropout = identity)."""
    A = jnp.logaddexp(p["A"][0], 0.0)
    A = A / jnp.maximum(jnp.sum(jnp.abs(A), axis=-1, keepdims=True), L1_EPS)
    values = x @ p["wv"] + p["bv"]
    new_x = jnp.einsum("kl,bld->bkd", A, values)
    new_x = new_x @ p["wo"] + p["bo"]
    x1 = _layernorm(x + new_x, p["g1"], p["be1"])
    y = jnp.maximum(x1 @ p["w1"] + p["b1"], 0.0)
    y = y @ p["w2"] + p["b2"]
    return _layernorm(x1 + y, p["g2"], p["be2"])


def reference_forward_mixed(x, p):
    """Reference mirroring the kernel's precision recipe: bf16 activations / matmul
    operands with f32 accumulation, f32 residual + LayerNorm math."""
    bf, f32 = jnp.bfloat16, jnp.float32
    xb = x.astype(bf)                      # kernel DMAs activations in bf16
    xr = xb.astype(f32)                    # residual path sees the bf16-rounded x
    A = jnp.logaddexp(p["A"][0], 0.0)
    A = (A / jnp.maximum(jnp.sum(A, axis=-1, keepdims=True), L1_EPS)).astype(bf)
    wv, wo = p["wv"].astype(bf), p["wo"].astype(bf)
    w1, w2 = p["w1"].astype(bf), p["w2"].astype(bf)
    values = jnp.dot(xb, wv, preferred_element_type=f32) + p["bv"]
    mixed = jnp.einsum("kl,bld->bkd", A, values.astype(bf), preferred_element_type=f32)
    new_x = jnp.dot(mixed.astype(bf), wo, preferred_element_type=f32) + p["bo"]
    x1 = _layernorm(xr + new_x, p["g1"], p["be1"])
    y = jnp.dot(x1.astype(bf), w1, preferred_element_type=f32) + p["b1"]
    y = jnp.maximum(y, 0.0)
    y = jnp.dot(y.astype(bf), w2, preferred_element_type=f32) + p["b2"]
    return _layernorm(x1 + y, p["g2"], p["be2"])


if __name__ == "__main__":
    B, L, D, DFF = 2, 8, 32, 64  # batch, token_num, d_model, d_ff
    key = jax.random.PRNGKey(0)
    kx, kp = jax.random.split(key)
    x = jax.random.normal(kx, (B, L, D), jnp.float32)
    params = make_params(kp, D, DFF, L)

    out = linear_encoder_pre_post_lin(x, params)
    out = jax.block_until_ready(out)

    ref_mixed = reference_forward_mixed(x, params)   # same precision recipe as the kernel
    ref_f32 = reference_forward_f32(x, params)       # full-f32 module semantics

    assert out.shape == (B, L, D)
    out_f32 = out.astype(jnp.float32)
    # kernel output is bf16; differences vs the mixed reference are bf16 output rounding
    # plus accumulation-order noise.
    assert jnp.allclose(out_f32, ref_mixed, atol=7e-3, rtol=7e-3), \
        "mismatch vs mixed-precision reference"
    assert jnp.allclose(out_f32, ref_f32, atol=4e-2, rtol=4e-2), \
        "mismatch vs f32 reference"
    print("KERNEL_OK")
</pallas_src>

<mosaic_0001>
module attributes {stable_mosaic.version = 11 : i64} {
  func.func @encoder_kernel(%arg0: i32, %arg1: memref<2x8x128xbf16, #tpu.memory_space<vmem>>, %arg2: memref<16x16xbf16, #tpu.memory_space<vmem>>, %arg3: memref<128x128xbf16, #tpu.memory_space<vmem>>, %arg4: memref<1x128xf32, #tpu.memory_space<vmem>>, %arg5: memref<128x128xbf16, #tpu.memory_space<vmem>>, %arg6: memref<1x128xf32, #tpu.memory_space<vmem>>, %arg7: memref<1x128xf32, #tpu.memory_space<vmem>>, %arg8: memref<1x128xf32, #tpu.memory_space<vmem>>, %arg9: memref<128x128xbf16, #tpu.memory_space<vmem>>, %arg10: memref<1x128xf32, #tpu.memory_space<vmem>>, %arg11: memref<128x128xbf16, #tpu.memory_space<vmem>>, %arg12: memref<1x128xf32, #tpu.memory_space<vmem>>, %arg13: memref<1x128xf32, #tpu.memory_space<vmem>>, %arg14: memref<1x128xf32, #tpu.memory_space<vmem>>, %arg15: memref<2x8x128xbf16, #tpu.memory_space<vmem>>) attributes {dimension_semantics = [#tpu.dimension_semantics<parallel>], iteration_bounds = array<i64: 1>, scalar_prefetch = 0 : i64, scratch_operands = 0 : i64, tpu.core_type = #tpu.core_type<tc>, window_params = [{transform_indices = @transform_0, window_bounds = array<i64: 2, 8, 128>}, {pipeline_mode = #tpu.pipeline_mode<synchronous>, transform_indices = @transform_1, window_bounds = array<i64: 16, 16>}, {pipeline_mode = #tpu.pipeline_mode<synchronous>, transform_indices = @transform_2, window_bounds = array<i64: 128, 128>}, {pipeline_mode = #tpu.pipeline_mode<synchronous>, transform_indices = @transform_3, window_bounds = array<i64: 1, 128>}, {pipeline_mode = #tpu.pipeline_mode<synchronous>, transform_indices = @transform_4, window_bounds = array<i64: 128, 128>}, {pipeline_mode = #tpu.pipeline_mode<synchronous>, transform_indices = @transform_5, window_bounds = array<i64: 1, 128>}, {pipeline_mode = #tpu.pipeline_mode<synchronous>, transform_indices = @transform_6, window_bounds = array<i64: 1, 128>}, {pipeline_mode = #tpu.pipeline_mode<synchronous>, transform_indices = @transform_7, window_bounds = array<i64: 1, 128>}, {pipeline_mode = #tpu.pipeline_mode<synchronous>, transform_indices = @transform_8, window_bounds = array<i64: 128, 128>}, {pipeline_mode = #tpu.pipeline_mode<synchronous>, transform_indices = @transform_9, window_bounds = array<i64: 1, 128>}, {pipeline_mode = #tpu.pipeline_mode<synchronous>, transform_indices = @transform_10, window_bounds = array<i64: 128, 128>}, {pipeline_mode = #tpu.pipeline_mode<synchronous>, transform_indices = @transform_11, window_bounds = array<i64: 1, 128>}, {pipeline_mode = #tpu.pipeline_mode<synchronous>, transform_indices = @transform_12, window_bounds = array<i64: 1, 128>}, {pipeline_mode = #tpu.pipeline_mode<synchronous>, transform_indices = @transform_13, window_bounds = array<i64: 1, 128>}, {transform_indices = @transform_14, window_bounds = array<i64: 2, 8, 128>}]} {
    %0 = tpu.iota {dimensions = array<i32: 1>} : vector<1x128xi32>
    %c32_i32 = arith.constant 32 : i32
    %1 = vector.broadcast %c32_i32 : i32 to vector<1x128xi32>
    %2 = arith.cmpi slt, %0, %1 : vector<1x128xi32>
    %3 = arith.extui %2 : vector<1x128xi1> to vector<1x128xi32>
    %4 = arith.sitofp %3 : vector<1x128xi32> to vector<1x128xf32>
    %c0 = arith.constant 0 : index
    %c0_0 = arith.constant 0 : index
    %c0_1 = arith.constant 0 : index
    %5 = vector.load %arg1[%c0, %c0_0, %c0_1] : memref<2x8x128xbf16, #tpu.memory_space<vmem>>, vector<2x8x128xbf16>
    %6 = arith.extf %5 : vector<2x8x128xbf16> to vector<2x8x128xf32>
    %7 = vector.shape_cast %6 : vector<2x8x128xf32> to vector<16x128xf32>
    %8 = arith.truncf %7 : vector<16x128xf32> to vector<16x128xbf16>
    %c0_2 = arith.constant 0 : index
    %c0_3 = arith.constant 0 : index
    %9 = vector.load %arg3[%c0_2, %c0_3] : memref<128x128xbf16, #tpu.memory_space<vmem>>, vector<128x128xbf16>
    %cst = arith.constant dense<0.000000e+00> : vector<16x128xf32>
    %10 = tpu.matmul %8, %9, %cst {dimension_numbers = #tpu.dot_dimension_numbers<[1], [0], [0], [1], [0, 0, 1, 1], [], []>} : vector<16x128xbf16>, vector<128x128xbf16>, vector<16x128xf32> -> vector<16x128xf32>
    %c0_4 = arith.constant 0 : index
    %c0_5 = arith.constant 0 : index
    %11 = vector.load %arg4[%c0_4, %c0_5] : memref<1x128xf32, #tpu.memory_space<vmem>>, vector<1x128xf32>
    %12 = vector.broadcast %11 : vector<1x128xf32> to vector<16x128xf32>
    %13 = arith.addf %10, %12 : vector<16x128xf32>
    %c0_6 = arith.constant 0 : index
    %c0_7 = arith.constant 0 : index
    %14 = vector.load %arg2[%c0_6, %c0_7] : memref<16x16xbf16, #tpu.memory_space<vmem>>, vector<16x16xbf16>
    %15 = arith.truncf %13 : vector<16x128xf32> to vector<16x128xbf16>
    %cst_8 = arith.constant dense<0.000000e+00> : vector<16x128xf32>
    %16 = tpu.matmul %14, %15, %cst_8 {dimension_numbers = #tpu.dot_dimension_numbers<[1], [0], [0], [1], [0, 0, 1, 1], [], []>} : vector<16x16xbf16>, vector<16x128xbf16>, vector<16x128xf32> -> vector<16x128xf32>
    %17 = arith.truncf %16 : vector<16x128xf32> to vector<16x128xbf16>
    %c0_9 = arith.constant 0 : index
    %c0_10 = arith.constant 0 : index
    %18 = vector.load %arg5[%c0_9, %c0_10] : memref<128x128xbf16, #tpu.memory_space<vmem>>, vector<128x128xbf16>
    %cst_11 = arith.constant dense<0.000000e+00> : vector<16x128xf32>
    %19 = tpu.matmul %17, %18, %cst_11 {dimension_numbers = #tpu.dot_dimension_numbers<[1], [0], [0], [1], [0, 0, 1, 1], [], []>} : vector<16x128xbf16>, vector<128x128xbf16>, vector<16x128xf32> -> vector<16x128xf32>
    %c0_12 = arith.constant 0 : index
    %c0_13 = arith.constant 0 : index
    %20 = vector.load %arg6[%c0_12, %c0_13] : memref<1x128xf32, #tpu.memory_space<vmem>>, vector<1x128xf32>
    %21 = vector.broadcast %20 : vector<1x128xf32> to vector<16x128xf32>
    %22 = arith.addf %19, %21 : vector<16x128xf32>
    %23 = arith.addf %7, %22 : vector<16x128xf32>
    %c0_14 = arith.constant 0 : index
    %c0_15 = arith.constant 0 : index
    %24 = vector.load %arg7[%c0_14, %c0_15] : memref<1x128xf32, #tpu.memory_space<vmem>>, vector<1x128xf32>
    %c0_16 = arith.constant 0 : index
    %c0_17 = arith.constant 0 : index
    %25 = vector.load %arg8[%c0_16, %c0_17] : memref<1x128xf32, #tpu.memory_space<vmem>>, vector<1x128xf32>
    %cst_18 = arith.constant dense<0.000000e+00> : vector<16xf32>
    %26 = vector.multi_reduction <add>, %23, %cst_18 [1] : vector<16x128xf32> to vector<16xf32>
    %27 = vector.shape_cast %26 : vector<16xf32> to vector<16x1xf32>
    %cst_19 = arith.constant 3.125000e-02 : f32
    %28 = vector.broadcast %cst_19 : f32 to vector<16x1xf32>
    %29 = arith.mulf %27, %28 : vector<16x1xf32>
    %30 = vector.broadcast %29 : vector<16x1xf32> to vector<16x128xf32>
    %31 = arith.subf %23, %30 : vector<16x128xf32>
    %32 = vector.broadcast %4 : vector<1x128xf32> to vector<16x128xf32>
    %33 = arith.mulf %31, %32 : vector<16x128xf32>
    %34 = arith.mulf %33, %33 : vector<16x128xf32>
    %cst_20 = arith.constant dense<0.000000e+00> : vector<16xf32>
    %35 = vector.multi_reduction <add>, %34, %cst_20 [1] : vector<16x128xf32> to vector<16xf32>
    %36 = vector.shape_cast %35 : vector<16xf32> to vector<16x1xf32>
    %cst_21 = arith.constant 3.125000e-02 : f32
    %37 = vector.broadcast %cst_21 : f32 to vector<16x1xf32>
    %38 = arith.mulf %36, %37 : vector<16x1xf32>
    %cst_22 = arith.constant 9.99999974E-6 : f32
    %39 = vector.broadcast %cst_22 : f32 to vector<16x1xf32>
    %40 = arith.addf %38, %39 : vector<16x1xf32>
    %41 = math.rsqrt %40 : vector<16x1xf32>
    %42 = vector.broadcast %41 : vector<16x1xf32> to vector<16x128xf32>
    %43 = arith.mulf %33, %42 : vector<16x128xf32>
    %44 = vector.broadcast %24 : vector<1x128xf32> to vector<16x128xf32>
    %45 = arith.mulf %43, %44 : vector<16x128xf32>
    %46 = vector.broadcast %25 : vector<1x128xf32> to vector<16x128xf32>
    %47 = arith.addf %45, %46 : vector<16x128xf32>
    %48 = arith.truncf %47 : vector<16x128xf32> to vector<16x128xbf16>
    %c0_23 = arith.constant 0 : index
    %c0_24 = arith.constant 0 : index
    %49 = vector.load %arg9[%c0_23, %c0_24] : memref<128x128xbf16, #tpu.memory_space<vmem>>, vector<128x128xbf16>
    %cst_25 = arith.constant dense<0.000000e+00> : vector<16x128xf32>
    %50 = tpu.matmul %48, %49, %cst_25 {dimension_numbers = #tpu.dot_dimension_numbers<[1], [0], [0], [1], [0, 0, 1, 1], [], []>} : vector<16x128xbf16>, vector<128x128xbf16>, vector<16x128xf32> -> vector<16x128xf32>
    %c0_26 = arith.constant 0 : index
    %c0_27 = arith.constant 0 : index
    %51 = vector.load %arg10[%c0_26, %c0_27] : memref<1x128xf32, #tpu.memory_space<vmem>>, vector<1x128xf32>
    %52 = vector.broadcast %51 : vector<1x128xf32> to vector<16x128xf32>
    %53 = arith.addf %50, %52 : vector<16x128xf32>
    %cst_28 = arith.constant 0.000000e+00 : f32
    %54 = vector.broadcast %cst_28 : f32 to vector<16x128xf32>
    %55 = arith.maximumf %53, %54 : vector<16x128xf32>
    %56 = arith.truncf %55 : vector<16x128xf32> to vector<16x128xbf16>
    %c0_29 = arith.constant 0 : index
    %c0_30 = arith.constant 0 : index
    %57 = vector.load %arg11[%c0_29, %c0_30] : memref<128x128xbf16, #tpu.memory_space<vmem>>, vector<128x128xbf16>
    %cst_31 = arith.constant dense<0.000000e+00> : vector<16x128xf32>
    %58 = tpu.matmul %56, %57, %cst_31 {dimension_numbers = #tpu.dot_dimension_numbers<[1], [0], [0], [1], [0, 0, 1, 1], [], []>} : vector<16x128xbf16>, vector<128x128xbf16>, vector<16x128xf32> -> vector<16x128xf32>
    %c0_32 = arith.constant 0 : index
    %c0_33 = arith.constant 0 : index
    %59 = vector.load %arg12[%c0_32, %c0_33] : memref<1x128xf32, #tpu.memory_space<vmem>>, vector<1x128xf32>
    %60 = vector.broadcast %59 : vector<1x128xf32> to vector<16x128xf32>
    %61 = arith.addf %58, %60 : vector<16x128xf32>
    %62 = arith.addf %47, %61 : vector<16x128xf32>
    %c0_34 = arith.constant 0 : index
    %c0_35 = arith.constant 0 : index
    %63 = vector.load %arg13[%c0_34, %c0_35] : memref<1x128xf32, #tpu.memory_space<vmem>>, vector<1x128xf32>
    %c0_36 = arith.constant 0 : index
    %c0_37 = arith.constant 0 : index
    %64 = vector.load %arg14[%c0_36, %c0_37] : memref<1x128xf32, #tpu.memory_space<vmem>>, vector<1x128xf32>
    %cst_38 = arith.constant dense<0.000000e+00> : vector<16xf32>
    %65 = vector.multi_reduction <add>, %62, %cst_38 [1] : vector<16x128xf32> to vector<16xf32>
    %66 = vector.shape_cast %65 : vector<16xf32> to vector<16x1xf32>
    %cst_39 = arith.constant 3.125000e-02 : f32
    %67 = vector.broadcast %cst_39 : f32 to vector<16x1xf32>
    %68 = arith.mulf %66, %67 : vector<16x1xf32>
    %69 = vector.broadcast %68 : vector<16x1xf32> to vector<16x128xf32>
    %70 = arith.subf %62, %69 : vector<16x128xf32>
    %71 = vector.broadcast %4 : vector<1x128xf32> to vector<16x128xf32>
    %72 = arith.mulf %70, %71 : vector<16x128xf32>
    %73 = arith.mulf %72, %72 : vector<16x128xf32>
    %cst_40 = arith.constant dense<0.000000e+00> : vector<16xf32>
    %74 = vector.multi_reduction <add>, %73, %cst_40 [1] : vector<16x128xf32> to vector<16xf32>
    %75 = vector.shape_cast %74 : vector<16xf32> to vector<16x1xf32>
    %cst_41 = arith.constant 3.125000e-02 : f32
    %76 = vector.broadcast %cst_41 : f32 to vector<16x1xf32>
    %77 = arith.mulf %75, %76 : vector<16x1xf32>
    %cst_42 = arith.constant 9.99999974E-6 : f32
    %78 = vector.broadcast %cst_42 : f32 to vector<16x1xf32>
    %79 = arith.addf %77, %78 : vector<16x1xf32>
    %80 = math.rsqrt %79 : vector<16x1xf32>
    %81 = vector.broadcast %80 : vector<16x1xf32> to vector<16x128xf32>
    %82 = arith.mulf %72, %81 : vector<16x128xf32>
    %83 = vector.broadcast %63 : vector<1x128xf32> to vector<16x128xf32>
    %84 = arith.mulf %82, %83 : vector<16x128xf32>
    %85 = vector.broadcast %64 : vector<1x128xf32> to vector<16x128xf32>
    %86 = arith.addf %84, %85 : vector<16x128xf32>
    %87 = vector.shape_cast %86 : vector<16x128xf32> to vector<2x8x128xf32>
    %88 = arith.truncf %87 : vector<2x8x128xf32> to vector<2x8x128xbf16>
    %c0_43 = arith.constant 0 : index
    %c0_44 = arith.constant 0 : index
    %c0_45 = arith.constant 0 : index
    %89 = vector.load %arg15[%c0_43, %c0_44, %c0_45] : memref<2x8x128xbf16, #tpu.memory_space<vmem>>, vector<2x8x128xbf16>
    tpu.vector_store %arg15[%c0_43, %c0_44, %c0_45], %88 {strides = array<i32>} : memref<2x8x128xbf16, #tpu.memory_space<vmem>>, vector<2x8x128xbf16>,
    return
  }
  func.func @transform_0(%arg0: i32) -> (i32, i32, i32) {
    %c0_i32 = arith.constant 0 : i32
    %c0_i32_0 = arith.constant 0 : i32
    %c0_i32_1 = arith.constant 0 : i32
    return %arg0, %c0_i32, %c0_i32_0 : i32, i32, i32
  }
  func.func @transform_1(%arg0: i32) -> (i32, i32) {
    %c0_i32 = arith.constant 0 : i32
    %c0_i32_0 = arith.constant 0 : i32
    %c0_i32_1 = arith.constant 0 : i32
    return %c0_i32, %c0_i32_0 : i32, i32
  }
  func.func @transform_2(%arg0: i32) -> (i32, i32) {
    %c0_i32 = arith.constant 0 : i32
    %c0_i32_0 = arith.constant 0 : i32
    %c0_i32_1 = arith.constant 0 : i32
    return %c0_i32, %c0_i32_0 : i32, i32
  }
  func.func @transform_3(%arg0: i32) -> (i32, i32) {
    %c0_i32 = arith.constant 0 : i32
    %c0_i32_0 = arith.constant 0 : i32
    %c0_i32_1 = arith.constant 0 : i32
    return %c0_i32, %c0_i32_0 : i32, i32
  }
  func.func @transform_4(%arg0: i32) -> (i32, i32) {
    %c0_i32 = arith.constant 0 : i32
    %c0_i32_0 = arith.constant 0 : i32
    %c0_i32_1 = arith.constant 0 : i32
    return %c0_i32, %c0_i32_0 : i32, i32
  }
  func.func @transform_5(%arg0: i32) -> (i32, i32) {
    %c0_i32 = arith.constant 0 : i32
    %c0_i32_0 = arith.constant 0 : i32
    %c0_i32_1 = arith.constant 0 : i32
    return %c0_i32, %c0_i32_0 : i32, i32
  }
  func.func @transform_6(%arg0: i32) -> (i32, i32) {
    %c0_i32 = arith.constant 0 : i32
    %c0_i32_0 = arith.constant 0 : i32
    %c0_i32_1 = arith.constant 0 : i32
    return %c0_i32, %c0_i32_0 : i32, i32
  }
  func.func @transform_7(%arg0: i32) -> (i32, i32) {
    %c0_i32 = arith.constant 0 : i32
    %c0_i32_0 = arith.constant 0 : i32
    %c0_i32_1 = arith.constant 0 : i32
    return %c0_i32, %c0_i32_0 : i32, i32
  }
  func.func @transform_8(%arg0: i32) -> (i32, i32) {
    %c0_i32 = arith.constant 0 : i32
    %c0_i32_0 = arith.constant 0 : i32
    %c0_i32_1 = arith.constant 0 : i32
    return %c0_i32, %c0_i32_0 : i32, i32
  }
  func.func @transform_9(%arg0: i32) -> (i32, i32) {
    %c0_i32 = arith.constant 0 : i32
    %c0_i32_0 = arith.constant 0 : i32
    %c0_i32_1 = arith.constant 0 : i32
    return %c0_i32, %c0_i32_0 : i32, i32
  }
  func.func @transform_10(%arg0: i32) -> (i32, i32) {
    %c0_i32 = arith.constant 0 : i32
    %c0_i32_0 = arith.constant 0 : i32
    %c0_i32_1 = arith.constant 0 : i32
    return %c0_i32, %c0_i32_0 : i32, i32
  }
  func.func @transform_11(%arg0: i32) -> (i32, i32) {
    %c0_i32 = arith.constant 0 : i32
    %c0_i32_0 = arith.constant 0 : i32
    %c0_i32_1 = arith.constant 0 : i32
    return %c0_i32, %c0_i32_0 : i32, i32
  }
  func.func @transform_12(%arg0: i32) -> (i32, i32) {
    %c0_i32 = arith.constant 0 : i32
    %c0_i32_0 = arith.constant 0 : i32
    %c0_i32_1 = arith.constant 0 : i32
    return %c0_i32, %c0_i32_0 : i32, i32
  }
  func.func @transform_13(%arg0: i32) -> (i32, i32) {
    %c0_i32 = arith.constant 0 : i32
    %c0_i32_0 = arith.constant 0 : i32
    %c0_i32_1 = arith.constant 0 : i32
    return %c0_i32, %c0_i32_0 : i32, i32
  }
  func.func @transform_14(%arg0: i32) -> (i32, i32, i32) {
    %c0_i32 = arith.constant 0 : i32
    %c0_i32_0 = arith.constant 0 : i32
    %c0_i32_1 = arith.constant 0 : i32
    return %arg0, %c0_i32, %c0_i32_0 : i32, i32, i32
  }
}

</mosaic_0001>

<llo_original>
// kernel: tpu_custom_call.1
$region0: #{tpu_custom_call.1}
  #allocation0 [shape = 'u32[]', space=smem, size = 0x4, offset = 0x4, fixed_abs, tag = 'smem constant byte address 0x4 - core index']
  #allocation1 [shape = 'u32[72,128]{1,0:T(1,128)}', space=vmem, size = 0x9000, scoped, tag = 'internal scratch']
  %s0 = inlined_call_operand.hbm [shape: bf16[2,8,128], index: 0, kind: input, shape index: {}]
  %s1 = inlined_call_operand.hbm [shape: bf16[16,16], index: 1, kind: input, shape index: {}]
  %s2 = inlined_call_operand.hbm [shape: bf16[128,128], index: 2, kind: input, shape index: {}]
  %s3 = inlined_call_operand.vmem [shape: f32[1,128], index: 3, kind: input, shape index: {}]
  %s4 = inlined_call_operand.hbm [shape: bf16[128,128], index: 4, kind: input, shape index: {}]
  %s5 = inlined_call_operand.vmem [shape: f32[1,128], index: 5, kind: input, shape index: {}]
  %s6 = inlined_call_operand.vmem [shape: f32[1,128], index: 6, kind: input, shape index: {}]
  %s7 = inlined_call_operand.vmem [shape: f32[1,128], index: 7, kind: input, shape index: {}]
  %s8 = inlined_call_operand.hbm [shape: bf16[128,128], index: 8, kind: input, shape index: {}]
  %s9 = inlined_call_operand.vmem [shape: f32[1,128], index: 9, kind: input, shape index: {}]
  %s10 = inlined_call_operand.hbm [shape: bf16[128,128], index: 10, kind: input, shape index: {}]
  %s11 = inlined_call_operand.vmem [shape: f32[1,128], index: 11, kind: input, shape index: {}]
  %s12 = inlined_call_operand.vmem [shape: f32[1,128], index: 12, kind: input, shape index: {}]
  %s13 = inlined_call_operand.vmem [shape: f32[1,128], index: 13, kind: input, shape index: {}]
  %s14 = inlined_call_operand.hbm [shape: bf16[2,8,128], index: 14, kind: output, shape index: {}]
  %s15 = sld [smem:[#allocation0]]
  $region90: #{tpu_custom_call.1} parent=0
    _
  %s17 = ssub.s32 1, %s15
  %s18 = scalar_select 0, %s17, %s15
  $region1: #{tpu_custom_call.1} parent=0
    #allocation2 [shape = 'u8[4096]{0}', space=vmem, size = 0x1000, scoped, tag = 'input window, operand 0, single buffered']
    #allocation3 [shape = 's32[1]{0}', space=sflag, size = 0x4, scoped, tag = 'scoped memory for tpu_custom_call.1']
    #allocation4 [shape = 's32[1]{0}', space=sflag, size = 0x4, scoped, tag = 'scoped memory for tpu_custom_call.1']
    #allocation5 [shape = 'u8[4096]{0}', space=vmem, size = 0x1000, scoped, tag = 'input window, operand 1, single buffered']
    #allocation6 [shape = 's32[1]{0}', space=sflag, size = 0x4, scoped, tag = 'scoped memory for tpu_custom_call.1']
    #allocation7 [shape = 'u8[32768]{0}', space=vmem, size = 0x8000, scoped, tag = 'input window, operand 2, single buffered']
    #allocation8 [shape = 'u8[32768]{0}', space=vmem, size = 0x8000, scoped, tag = 'input window, operand 4, single buffered']
    #allocation9 [shape = 's32[1]{0}', space=sflag, size = 0x4, scoped, tag = 'scoped memory for tpu_custom_call.1']
    #allocation10 [shape = 'u8[32768]{0}', space=vmem, size = 0x8000, scoped, tag = 'input window, operand 8, single buffered']
    #allocation11 [shape = 'u8[32768]{0}', space=vmem, size = 0x8000, scoped, tag = 'input window, operand 10, single buffered']
    #allocation12 [shape = 's32[1]{0}', space=sflag, size = 0x4, scoped, tag = 'scoped memory for tpu_custom_call.1']
    #allocation13 [shape = 'u8[4096]{0}', space=vmem, size = 0x1000, scoped, tag = 'output window, operand 0, single buffered']
    %19 = vsyncpa [#allocation3], 0
    %20 = vsyncpa [#allocation6], 0
    %21 = vsyncpa [#allocation9], 0
    %22 = vsyncpa [#allocation12], 0
    %23 = vsyncpa [#allocation4], 0
    // Predicated region
    $region2: #{tpu_custom_call.1} parent=1 // pred_check
      _
    $region3: #{tpu_custom_call.1} parent=1 // pred_check_branch
      %25 = sbr.rel (0) target = $region5
    $region4: #{tpu_custom_call.1} parent=1 // pred_region
      %27 = vsyncadd [#allocation3], 0
      %s28 = sshll.u32 %s0, 4
      %s29 = int_to_ptr.hbm [resolvable:$true] %s28
      %s30 = sshll.u32 [#allocation2], 4
      %s31 = int_to_ptr.vmem [resolvable:$true] %s30
      %36 = dma.hbm_to_vmem [thread:$0]  %s29, 128, %s31, [#allocation3], 64, 64, 4
    $region5: #{tpu_custom_call.1} parent=1 // pred_fallthru
      _
    // Predicated region
    $region6: #{tpu_custom_call.1} parent=1 // pred_check
      _
    $region7: #{tpu_custom_call.1} parent=1 // pred_check_branch
      %38 = sbr.rel (0) target = $region9
    $region8: #{tpu_custom_call.1} parent=1 // pred_region
      %40 = vsyncadd [#allocation6], 0
      %s41 = sshll.u32 %s1, 4
      %s42 = int_to_ptr.hbm [resolvable:$true] %s41
      %s43 = sshll.u32 [#allocation5], 4
      %s44 = int_to_ptr.vmem [resolvable:$true] %s43
      %49 = dma.hbm_to_vmem [thread:$0]  %s42, 128, %s44, [#allocation6], 64, 64, 4
    $region9: #{tpu_custom_call.1} parent=1 // pred_fallthru
      _
    // Predicated region
    $region10: #{tpu_custom_call.1} parent=1 // pred_check
      _
    $region11: #{tpu_custom_call.1} parent=1 // pred_check_branch
      %51 = sbr.rel (0) target = $region13
    $region12: #{tpu_custom_call.1} parent=1 // pred_region
      %53 = vsyncadd [#allocation6], 0
      %s54 = sshll.u32 %s2, 4
      %s55 = int_to_ptr.hbm [resolvable:$true] %s54
      %s56 = sshll.u32 [#allocation7], 4
      %s57 = int_to_ptr.vmem [resolvable:$true] %s56
      %62 = dma.hbm_to_vmem [thread:$0]  %s55, 1024, %s57, [#allocation6], 64, 64, 4
    $region13: #{tpu_custom_call.1} parent=1 // pred_fallthru
      _
    // Predicated region
    $region14: #{tpu_custom_call.1} parent=1 // pred_check
      _
    $region15: #{tpu_custom_call.1} parent=1 // pred_check_branch
      %64 = sbr.rel (0) target = $region17
    $region16: #{tpu_custom_call.1} parent=1 // pred_region
      _
    $region17: #{tpu_custom_call.1} parent=1 // pred_fallthru
      _
    // Predicated region
    $region18: #{tpu_custom_call.1} parent=1 // pred_check
      _
    $region19: #{tpu_custom_call.1} parent=1 // pred_check_branch
      %66 = sbr.rel (0) target = $region21
    $region20: #{tpu_custom_call.1} parent=1 // pred_region
      %68 = vsyncadd [#allocation9], 0
      %s69 = sshll.u32 %s4, 4
      %s70 = int_to_ptr.hbm [resolvable:$true] %s69
      %s71 = sshll.u32 [#allocation8], 4
      %s72 = int_to_ptr.vmem [resolvable:$true] %s71
      %77 = dma.hbm_to_vmem [thread:$0]  %s70, 1024, %s72, [#allocation9], 64, 64, 4
    $region21: #{tpu_custom_call.1} parent=1 // pred_fallthru
      _
    // Predicated region
    $region22: #{tpu_custom_call.1} parent=1 // pred_check
      _
    $region23: #{tpu_custom_call.1} parent=1 // pred_check_branch
      %79 = sbr.rel (0) target = $region25
    $region24: #{tpu_custom_call.1} parent=1 // pred_region
      _
    $region25: #{tpu_custom_call.1} parent=1 // pred_fallthru
      _
    // Predicated region
    $region26: #{tpu_custom_call.1} parent=1 // pred_check
      _
    $region27: #{tpu_custom_call.1} parent=1 // pred_check_branch
      %81 = sbr.rel (0) target = $region29
    $region28: #{tpu_custom_call.1} parent=1 // pred_region
      _
    $region29: #{tpu_custom_call.1} parent=1 // pred_fallthru
      _
    // Predicated region
    $region30: #{tpu_custom_call.1} parent=1 // pred_check
      _
    $region31: #{tpu_custom_call.1} parent=1 // pred_check_branch
      %83 = sbr.rel (0) target = $region33
    $region32: #{tpu_custom_call.1} parent=1 // pred_region
      _
    $region33: #{tpu_custom_call.1} parent=1 // pred_fallthru
      _
    // Predicated region
    $region34: #{tpu_custom_call.1} parent=1 // pred_check
      _
    $region35: #{tpu_custom_call.1} parent=1 // pred_check_branch
      %85 = sbr.rel (0) target = $region37
    $region36: #{tpu_custom_call.1} parent=1 // pred_region
      %87 = vsyncadd [#allocation9], 0
      %s88 = sshll.u32 %s8, 4
      %s89 = int_to_ptr.hbm [resolvable:$true] %s88
      %s90 = sshll.u32 [#allocation10], 4
      %s91 = int_to_ptr.vmem [resolvable:$true] %s90
      %96 = dma.hbm_to_vmem [thread:$0]  %s89, 1024, %s91, [#allocation9], 64, 64, 4
    $region37: #{tpu_custom_call.1} parent=1 // pred_fallthru
      _
    // Predicated region
    $region38: #{tpu_custom_call.1} parent=1 // pred_check
      _
    $region39: #{tpu_custom_call.1} parent=1 // pred_check_branch
      %98 = sbr.rel (0) target = $region41
    $region40: #{tpu_custom_call.1} parent=1 // pred_region
      _
    $region41: #{tpu_custom_call.1} parent=1 // pred_fallthru
      _
    // Predicated region
    $region42: #{tpu_custom_call.1} parent=1 // pred_check
      _
    $region43: #{tpu_custom_call.1} parent=1 // pred_check_branch
      %100 = sbr.rel (0) target = $region45
    $region44: #{tpu_custom_call.1} parent=1 // pred_region
      %102 = vsyncadd [#allocation12], 0
      %s103 = sshll.u32 %s10, 4
      %s104 = int_to_ptr.hbm [resolvable:$true] %s103
      %s105 = sshll.u32 [#allocation11], 4
      %s106 = int_to_ptr.vmem [resolvable:$true] %s105
      %111 = dma.hbm_to_vmem [thread:$0]  %s104, 1024, %s106, [#allocation12], 64, 64, 4
    $region45: #{tpu_custom_call.1} parent=1 // pred_fallthru
      _
    // Predicated region
    $region46: #{tpu_custom_call.1} parent=1 // pred_check
      _
    $region47: #{tpu_custom_call.1} parent=1 // pred_check_branch
      %113 = sbr.rel (0) target = $region49
    $region48: #{tpu_custom_call.1} parent=1 // pred_region
      _
    $region49: #{tpu_custom_call.1} parent=1 // pred_fallthru
      _
    // Predicated region
    $region50: #{tpu_custom_call.1} parent=1 // pred_check
      _
    $region51: #{tpu_custom_call.1} parent=1 // pred_check_branch
      %115 = sbr.rel (0) target = $region53
    $region52: #{tpu_custom_call.1} parent=1 // pred_region
      _
    $region53: #{tpu_custom_call.1} parent=1 // pred_fallthru
      _
    // Predicated region
    $region54: #{tpu_custom_call.1} parent=1 // pred_check
      _
    $region55: #{tpu_custom_call.1} parent=1 // pred_check_branch
      %117 = sbr.rel (0) target = $region57
    $region56: #{tpu_custom_call.1} parent=1 // pred_region
      _
    $region57: #{tpu_custom_call.1} parent=1 // pred_fallthru
      _
    // Predicated region
    $region58: #{tpu_custom_call.1} parent=1 // pred_check
      _
    $region59: #{tpu_custom_call.1} parent=1 // pred_check_branch
      %119 = sbr.rel (0) target = $region61
    $region60: #{tpu_custom_call.1} parent=1 // pred_region
      %121 = dma.done [#allocation3], 128
    $region61: #{tpu_custom_call.1} parent=1 // pred_fallthru
      _
    // Predicated region
    $region62: #{tpu_custom_call.1} parent=1 // pred_check
      _
    $region63: #{tpu_custom_call.1} parent=1 // pred_check_branch
      %123 = sbr.rel (0) target = $region65
    $region64: #{tpu_custom_call.1} parent=1 // pred_region
      %125 = dma.done [#allocation6], 128
    $region65: #{tpu_custom_call.1} parent=1 // pred_fallthru
      _
    // Predicated region
    $region66: #{tpu_custom_call.1} parent=1 // pred_check
      _
    $region67: #{tpu_custom_call.1} parent=1 // pred_check_branch
      %127 = sbr.rel (0) target = $region69
    $region68: #{tpu_custom_call.1} parent=1 // pred_region
      %129 = dma.done [#allocation6], 1024
    $region69: #{tpu_custom_call.1} parent=1 // pred_fallthru
      _
    // Predicated region
    $region70: #{tpu_custom_call.1} parent=1 // pred_check
      _
    $region71: #{tpu_custom_call.1} parent=1 // pred_check_branch
      %131 = sbr.rel (0) target = $region73
    $region72: #{tpu_custom_call.1} parent=1 // pred_region
      %133 = dma.done [#allocation9], 1024
    $region73: #{tpu_custom_call.1} parent=1 // pred_fallthru
      _
    // Predicated region
    $region74: #{tpu_custom_call.1} parent=1 // pred_check
      _
    $region75: #{tpu_custom_call.1} parent=1 // pred_check_branch
      %135 = sbr.rel (0) target = $region77
    $region76: #{tpu_custom_call.1} parent=1 // pred_region
      %137 = dma.done [#allocation9], 1024
    $region77: #{tpu_custom_call.1} parent=1 // pred_fallthru
      _
    // Predicated region
    $region78: #{tpu_custom_call.1} parent=1 // pred_check
      _
    $region79: #{tpu_custom_call.1} parent=1 // pred_check_branch
      %139 = sbr.rel (0) target = $region81
    $region80: #{tpu_custom_call.1} parent=1 // pred_region
      %141 = dma.done [#allocation12], 1024
    $region81: #{tpu_custom_call.1} parent=1 // pred_fallthru
      _
    %v143 = vlaneseq
    %v144 = vand.u32 %v143, 127
    %vm145 = vcmp.lt.s32.totalorder %v144, 32
    %v146 = vsel %vm145, 1, 0
    %v147 = vcvt.s32.f32 %v146
    %v148 = vld [vmem:[#allocation2] sm:$0xf]
    %v149 = vld [vmem:[#allocation2 + $0x4] sm:$0xf]
    %v150 = vunpack.c.l.bf16 %v148
    %v151 = vunpack.c.l.bf16 %v149
    %v152 = vpack.c.bf16 %v151, %v150
    %v153 = vld [vmem:[#allocation7] sm:$0xf]
    %v154 = vld [vmem:[#allocation7 + $0x4] sm:$0xf]
    %v155 = vld [vmem:[#allocation7 + $0x8] sm:$0xf]
    %v156 = vld [vmem:[#allocation7 + $0xc] sm:$0xf]
    %v157 = vld [vmem:[#allocation7 + $0x10] sm:$0xf]
    %v158 = vld [vmem:[#allocation7 + $0x14] sm:$0xf]
    %v159 = vld [vmem:[#allocation7 + $0x18] sm:$0xf]
    %v160 = vld [vmem:[#allocation7 + $0x1c] sm:$0xf]
    %v161 = vld [vmem:[#allocation7 + $0x20] sm:$0xf]
    %v162 = vld [vmem:[#allocation7 + $0x24] sm:$0xf]
    %v163 = vld [vmem:[#allocation7 + $0x28] sm:$0xf]
    %v164 = vld [vmem:[#allocation7 + $0x2c] sm:$0xf]
    %v165 = vld [vmem:[#allocation7 + $0x30] sm:$0xf]
    %v166 = vld [vmem:[#allocation7 + $0x34] sm:$0xf]
    %v167 = vld [vmem:[#allocation7 + $0x38] sm:$0xf]
    %v168 = vld [vmem:[#allocation7 + $0x3c] sm:$0xf]
    %v169 = vld [vmem:[%s3] sm:$0x1]
    %v171 = vperm.slane %v169, 0
    %v189 = vunpack.c.l.b16 %v153
    %v190 = vunpack.c.l.b16 %v154
    %v191 = vunpack.c.l.b16 %v155
    %v192 = vunpack.c.l.b16 %v156
    %v193 = vunpack.c.l.b16 %v157
    %v194 = vunpack.c.l.b16 %v158
    %v195 = vunpack.c.l.b16 %v159
    %v196 = vunpack.c.l.b16 %v160
    %v197 = vunpack.c.l.b16 %v161
    %v198 = vunpack.c.l.b16 %v162
    %v199 = vunpack.c.l.b16 %v163
    %v200 = vunpack.c.l.b16 %v164
    %v201 = vunpack.c.l.b16 %v165
    %v202 = vunpack.c.l.b16 %v166
    %v203 = vunpack.c.l.b16 %v167
    %v204 = vunpack.c.l.b16 %v168
    %v205 = vpack.c.b16 %v190, %v189
    %v206 = vpack.c.b16 %v192, %v191
    %v207 = vpack.c.b16 %v194, %v193
    %v208 = vpack.c.b16 %v196, %v195
    %v209 = vpack.c.b16 %v198, %v197
    %v210 = vpack.c.b16 %v200, %v199
    %v211 = vpack.c.b16 %v202, %v201
    %v212 = vpack.c.b16 %v204, %v203
    %221 = vmatpush.bf16.msra.mxu0 %v212
    %222 = vmatpush.bf16.msra.mxu0 %v211
    %223 = vmatpush.bf16.msra.mxu0 %v210
    %224 = vmatpush.bf16.msra.mxu0 %v209
    %225 = vmatpush.bf16.msra.mxu0 %v208
    %226 = vmatpush.bf16.msra.mxu0 %v207
    %227 = vmatpush.bf16.msra.mxu0 %v206
    %228 = vmatpush.bf16.msra.mxu0 %v205
    %229 = vmatmul.bf16.gmra.mxu0 %v152
    %v230 = vpop.f32.mrf.mxu0
    %v231 = vadd.f32 %v171, %v230
    %v232 = vpop.f32.mrf.mxu0
    %v233 = vadd.f32 %v171, %v232
    %234 = vdwg.mxu0
    %v235 = vld [vmem:[#allocation5] sm:$0xf]
    %v236 = vld [vmem:[#allocation5 + $0x4] sm:$0xf]
    %v237 = vpack.c.bf16 %v233, %v231
    %v240 = vunpack.c.l.b16 %v235
    %v241 = vunpack.c.l.b16 %v236
    %v242 = vpack.c.b16 %v241, %v240
    %vm243 = vcmask 130048
    %v245 = vsel %vm243, %v242, 0
    %247 = vmatpush.bf16.msra.mxu0 0
    %248 = vmatpush.bf16.msra.mxu0 0
    %249 = vmatpush.bf16.msra.mxu0 0
    %250 = vmatpush.bf16.msra.mxu0 0
    %251 = vmatpush.bf16.msra.mxu0 0
    %252 = vmatpush.bf16.msra.mxu0 0
    %253 = vmatpush.bf16.msra.mxu0 0
    %254 = vmatpush.bf16.msra.mxu0 %v237
    %255 = vmatmul.bf16.gmra.mxu0 %v245
    %v256 = vpop.f32.mrf.mxu0
    %v257 = vadd.f32 0.0, %v256
    %v258 = vpop.f32.mrf.mxu0
    %v259 = vadd.f32 0.0, %v258
    %260 = vdwg.mxu0
    %v261 = vpack.c.bf16 %v259, %v257
    %v262 = vld [vmem:[#allocation8] sm:$0xf]
    %v263 = vld [vmem:[#allocation8 + $0x4] sm:$0xf]
    %v264 = vld [vmem:[#allocation8 + $0x8] sm:$0xf]
    %v265 = vld [vmem:[#allocation8 + $0xc] sm:$0xf]
    %v266 = vld [vmem:[#allocation8 + $0x10] sm:$0xf]
    %v267 = vld [vmem:[#allocation8 + $0x14] sm:$0xf]
    %v268 = vld [vmem:[#allocation8 + $0x18] sm:$0xf]
    %v269 = vld [vmem:[#allocation8 + $0x1c] sm:$0xf]
    %v270 = vld [vmem:[#allocation8 + $0x20] sm:$0xf]
    %v271 = vld [vmem:[#allocation8 + $0x24] sm:$0xf]
    %v272 = vld [vmem:[#allocation8 + $0x28] sm:$0xf]
    %v273 = vld [vmem:[#allocation8 + $0x2c] sm:$0xf]
    %v274 = vld [vmem:[#allocation8 + $0x30] sm:$0xf]
    %v275 = vld [vmem:[#allocation8 + $0x34] sm:$0xf]
    %v276 = vld [vmem:[#allocation8 + $0x38] sm:$0xf]
    %v277 = vld [vmem:[#allocation8 + $0x3c] sm:$0xf]
    %v278 = vld [vmem:[%s5] sm:$0x1]
    %v280 = vperm.slane %v278, 0
    %v298 = vunpack.c.l.b16 %v262
    %v299 = vunpack.c.l.b16 %v263
    %v300 = vunpack.c.l.b16 %v264
    %v301 = vunpack.c.l.b16 %v265
    %v302 = vunpack.c.l.b16 %v266
    %v303 = vunpack.c.l.b16 %v267
    %v304 = vunpack.c.l.b16 %v268
    %v305 = vunpack.c.l.b16 %v269
    %v306 = vunpack.c.l.b16 %v270
    %v307 = vunpack.c.l.b16 %v271
    %v308 = vunpack.c.l.b16 %v272
    %v309 = vunpack.c.l.b16 %v273
    %v310 = vunpack.c.l.b16 %v274
    %v311 = vunpack.c.l.b16 %v275
    %v312 = vunpack.c.l.b16 %v276
    %v313 = vunpack.c.l.b16 %v277
    %v314 = vpack.c.b16 %v299, %v298
    %v315 = vpack.c.b16 %v301, %v300
    %v316 = vpack.c.b16 %v303, %v302
    %v317 = vpack.c.b16 %v305, %v304
    %v318 = vpack.c.b16 %v307, %v306
    %v319 = vpack.c.b16 %v309, %v308
    %v320 = vpack.c.b16 %v311, %v310
    %v321 = vpack.c.b16 %v313, %v312
    %330 = vmatpush.bf16.msra.mxu0 %v321
    %331 = vmatpush.bf16.msra.mxu0 %v320
    %332 = vmatpush.bf16.msra.mxu0 %v319
    %333 = vmatpush.bf16.msra.mxu0 %v318
    %334 = vmatpush.bf16.msra.mxu0 %v317
    %335 = vmatpush.bf16.msra.mxu0 %v316
    %336 = vmatpush.bf16.msra.mxu0 %v315
    %337 = vmatpush.bf16.msra.mxu0 %v314
    %338 = vmatmul.bf16.gmra.mxu0 %v261
    %v339 = vpop.f32.mrf.mxu0
    %v340 = vadd.f32 %v280, %v339
    %v341 = vpop.f32.mrf.mxu0
    %v342 = vadd.f32 %v280, %v341
    %343 = vdwg.mxu0
    %v344 = vadd.f32 %v150, %v340
    %v345 = vadd.f32 %v151, %v342
    %v346 = vld [vmem:[%s6] sm:$0x1]
    %v347 = vld [vmem:[%s7] sm:$0x1]
    %348 = vadd.xlane.f32.xlu0 %v344
    %v349 = vpop.xlane.xlu0 %348
    %350 = vadd.xlane.f32.xlu0 %v345
    %v351 = vpop.xlane.xlu0 %350
    %v352 = vmul.f32 %v349, 0.03125
    %v353 = vmul.f32 %v351, 0.03125
    %v354 = vsub.f32 %v344, %v352
    %v355 = vsub.f32 %v345, %v353
    %v356 = vmul.f32 %v354, %v147
    %v357 = vmul.f32 %v355, %v147
    %v358 = vmul.f32 %v356, %v356
    %v359 = vmul.f32 %v357, %v357
    %360 = vadd.xlane.f32.xlu0 %v358
    %v361 = vpop.xlane.xlu0 %360
    %362 = vadd.xlane.f32.xlu0 %v359
    %v363 = vpop.xlane.xlu0 %362
    %v364 = vmul.f32 %v361, 0.03125
    %v365 = vmul.f32 %v363, 0.03125
    %v366 = vadd.f32 %v364, 1e-05
    %v367 = vadd.f32 %v365, 1e-05
    %v368 = vrsqrt.pop %v366
    %v369 = vmul.f32 %v368, %v366
    %v370 = vmul.f32 %v369, %v368
    %v371 = vmul.f32 0.5, %v370
    %v372 = vsub.f32 1.5, %v371
    %v373 = vmul.f32 %v368, %v372
    %vm374 = vweird.f32 %v366
    %vm375 = vweird.f32 %v368
    %vm376 = vmor %vm374, %vm375
    %v377 = vsel %vm376, %v368, %v373
    %v378 = vrsqrt.pop %v367
    %v379 = vmul.f32 %v378, %v367
    %v380 = vmul.f32 %v379, %v378
    %v381 = vmul.f32 0.5, %v380
    %v382 = vsub.f32 1.5, %v381
    %v383 = vmul.f32 %v378, %v382
    %vm384 = vweird.f32 %v367
    %vm385 = vweird.f32 %v378
    %vm386 = vmor %vm384, %vm385
    %v387 = vsel %vm386, %v378, %v383
    %v388 = vmul.f32 %v356, %v377
    %v389 = vmul.f32 %v357, %v387
    %v391 = vperm.slane %v346, 0
    %v393 = vmul.f32 %v388, %v391
    %v394 = vmul.f32 %v389, %v391
    %v396 = vperm.slane %v347, 0
    %v398 = vadd.f32 %v393, %v396
    %v399 = vadd.f32 %v394, %v396
    %v400 = vpack.c.bf16 %v399, %v398
    %v401 = vld [vmem:[#allocation10] sm:$0xf]
    %v402 = vld [vmem:[#allocation10 + $0x4] sm:$0xf]
    %v403 = vld [vmem:[#allocation10 + $0x8] sm:$0xf]
    %v404 = vld [vmem:[#allocation10 + $0xc] sm:$0xf]
    %v405 = vld [vmem:[#allocation10 + $0x10] sm:$0xf]
    %v406 = vld [vmem:[#allocation10 + $0x14] sm:$0xf]
    %v407 = vld [vmem:[#allocation10 + $0x18] sm:$0xf]
    %v408 = vld [vmem:[#allocation10 + $0x1c] sm:$0xf]
    %v409 = vld [vmem:[#allocation10 + $0x20] sm:$0xf]
    %v410 = vld [vmem:[#allocation10 + $0x24] sm:$0xf]
    %v411 = vld [vmem:[#allocation10 + $0x28] sm:$0xf]
    %v412 = vld [vmem:[#allocation10 + $0x2c] sm:$0xf]
    %v413 = vld [vmem:[#allocation10 + $0x30] sm:$0xf]
    %v414 = vld [vmem:[#allocation10 + $0x34] sm:$0xf]
    %v415 = vld [vmem:[#allocation10 + $0x38] sm:$0xf]
    %v416 = vld [vmem:[#allocation10 + $0x3c] sm:$0xf]
    %v417 = vld [vmem:[%s9] sm:$0x1]
    %v419 = vperm.slane %v417, 0
    %v437 = vunpack.c.l.b16 %v401
    %v438 = vunpack.c.l.b16 %v402
    %v439 = vunpack.c.l.b16 %v403
    %v440 = vunpack.c.l.b16 %v404
    %v441 = vunpack.c.l.b16 %v405
    %v442 = vunpack.c.l.b16 %v406
    %v443 = vunpack.c.l.b16 %v407
    %v444 = vunpack.c.l.b16 %v408
    %v445 = vunpack.c.l.b16 %v409
    %v446 = vunpack.c.l.b16 %v410
    %v447 = vunpack.c.l.b16 %v411
    %v448 = vunpack.c.l.b16 %v412
    %v449 = vunpack.c.l.b16 %v413
    %v450 = vunpack.c.l.b16 %v414
    %v451 = vunpack.c.l.b16 %v415
    %v452 = vunpack.c.l.b16 %v416
    %v453 = vpack.c.b16 %v438, %v437
    %v454 = vpack.c.b16 %v440, %v439
    %v455 = vpack.c.b16 %v442, %v441
    %v456 = vpack.c.b16 %v444, %v443
    %v457 = vpack.c.b16 %v446, %v445
    %v458 = vpack.c.b16 %v448, %v447
    %v459 = vpack.c.b16 %v450, %v449
    %v460 = vpack.c.b16 %v452, %v451
    %469 = vmatpush.bf16.msra.mxu0 %v460
    %470 = vmatpush.bf16.msra.mxu0 %v459
    %471 = vmatpush.bf16.msra.mxu0 %v458
    %472 = vmatpush.bf16.msra.mxu0 %v457
    %473 = vmatpush.bf16.msra.mxu0 %v456
    %474 = vmatpush.bf16.msra.mxu0 %v455
    %475 = vmatpush.bf16.msra.mxu0 %v454
    %476 = vmatpush.bf16.msra.mxu0 %v453
    %477 = vmatmul.bf16.gmra.mxu0 %v400
    %v478 = vpop.f32.mrf.mxu0
    %v479 = vadd.f32 %v419, %v478
    %v480 = vpop.f32.mrf.mxu0
    %v481 = vadd.f32 %v419, %v480
    %482 = vdwg.mxu0
    %v483 = vmax.f32 %v479, 0.0
    %v484 = vmax.f32 %v481, 0.0
    %v485 = vpack.c.bf16 %v484, %v483
    %v486 = vld [vmem:[#allocation11] sm:$0xf]
    %v487 = vld [vmem:[#allocation11 + $0x4] sm:$0xf]
    %v488 = vld [vmem:[#allocation11 + $0x8] sm:$0xf]
    %v489 = vld [vmem:[#allocation11 + $0xc] sm:$0xf]
    %v490 = vld [vmem:[#allocation11 + $0x10] sm:$0xf]
    %v491 = vld [vmem:[#allocation11 + $0x14] sm:$0xf]
    %v492 = vld [vmem:[#allocation11 + $0x18] sm:$0xf]
    %v493 = vld [vmem:[#allocation11 + $0x1c] sm:$0xf]
    %v494 = vld [vmem:[#allocation11 + $0x20] sm:$0xf]
    %v495 = vld [vmem:[#allocation11 + $0x24] sm:$0xf]
    %v496 = vld [vmem:[#allocation11 + $0x28] sm:$0xf]
    %v497 = vld [vmem:[#allocation11 + $0x2c] sm:$0xf]
    %v498 = vld [vmem:[#allocation11 + $0x30] sm:$0xf]
    %v499 = vld [vmem:[#allocation11 + $0x34] sm:$0xf]
    %v500 = vld [vmem:[#allocation11 + $0x38] sm:$0xf]
    %v501 = vld [vmem:[#allocation11 + $0x3c] sm:$0xf]
    %v502 = vld [vmem:[%s11] sm:$0x1]
    %v504 = vperm.slane %v502, 0
    %v522 = vunpack.c.l.b16 %v486
    %v523 = vunpack.c.l.b16 %v487
    %v524 = vunpack.c.l.b16 %v488
    %v525 = vunpack.c.l.b16 %v489
    %v526 = vunpack.c.l.b16 %v490
    %v527 = vunpack.c.l.b16 %v491
    %v528 = vunpack.c.l.b16 %v492
    %v529 = vunpack.c.l.b16 %v493
    %v530 = vunpack.c.l.b16 %v494
    %v531 = vunpack.c.l.b16 %v495
    %v532 = vunpack.c.l.b16 %v496
    %v533 = vunpack.c.l.b16 %v497
    %v534 = vunpack.c.l.b16 %v498
    %v535 = vunpack.c.l.b16 %v499
    %v536 = vunpack.c.l.b16 %v500
    %v537 = vunpack.c.l.b16 %v501
    %v538 = vpack.c.b16 %v523, %v522
    %v539 = vpack.c.b16 %v525, %v524
    %v540 = vpack.c.b16 %v527, %v526
    %v541 = vpack.c.b16 %v529, %v528
    %v542 = vpack.c.b16 %v531, %v530
    %v543 = vpack.c.b16 %v533, %v532
    %v544 = vpack.c.b16 %v535, %v534
    %v545 = vpack.c.b16 %v537, %v536
    %554 = vmatpush.bf16.msra.mxu0 %v545
    %555 = vmatpush.bf16.msra.mxu0 %v544
    %556 = vmatpush.bf16.msra.mxu0 %v543
    %557 = vmatpush.bf16.msra.mxu0 %v542
    %558 = vmatpush.bf16.msra.mxu0 %v541
    %559 = vmatpush.bf16.msra.mxu0 %v540
    %560 = vmatpush.bf16.msra.mxu0 %v539
    %561 = vmatpush.bf16.msra.mxu0 %v538
    %562 = vmatmul.bf16.gmra.mxu0 %v485
    %v563 = vpop.f32.mrf.mxu0
    %v564 = vadd.f32 %v504, %v563
    %v565 = vpop.f32.mrf.mxu0
    %v566 = vadd.f32 %v504, %v565
    %567 = vdwg.mxu0
    %v568 = vadd.f32 %v398, %v564
    %v569 = vadd.f32 %v399, %v566
    %v570 = vld [vmem:[%s12] sm:$0x1]
    %v571 = vld [vmem:[%s13] sm:$0x1]
    %572 = vadd.xlane.f32.xlu0 %v568
    %v573 = vpop.xlane.xlu0 %572
    %574 = vadd.xlane.f32.xlu0 %v569
    %v575 = vpop.xlane.xlu0 %574
    %v576 = vmul.f32 %v573, 0.03125
    %v577 = vmul.f32 %v575, 0.03125
    %v578 = vsub.f32 %v568, %v576
    %v579 = vsub.f32 %v569, %v577
    %v580 = vmul.f32 %v578, %v147
    %v581 = vmul.f32 %v579, %v147
    %v582 = vmul.f32 %v580, %v580
    %v583 = vmul.f32 %v581, %v581
    %584 = vadd.xlane.f32.xlu0 %v582
    %v585 = vpop.xlane.xlu0 %584
    %586 = vadd.xlane.f32.xlu0 %v583
    %v587 = vpop.xlane.xlu0 %586
    %v588 = vmul.f32 %v585, 0.03125
    %v589 = vmul.f32 %v587, 0.03125
    %v590 = vadd.f32 %v588, 1e-05
    %v591 = vadd.f32 %v589, 1e-05
    %v592 = vrsqrt.pop %v590
    %v593 = vmul.f32 %v592, %v590
    %v594 = vmul.f32 %v593, %v592
    %v595 = vmul.f32 0.5, %v594
    %v596 = vsub.f32 1.5, %v595
    %v597 = vmul.f32 %v592, %v596
    %vm598 = vweird.f32 %v590
    %vm599 = vweird.f32 %v592
    %vm600 = vmor %vm598, %vm599
    %v601 = vsel %vm600, %v592, %v597
    %v602 = vrsqrt.pop %v591
    %v603 = vmul.f32 %v602, %v591
    %v604 = vmul.f32 %v603, %v602
    %v605 = vmul.f32 0.5, %v604
    %v606 = vsub.f32 1.5, %v605
    %v607 = vmul.f32 %v602, %v606
    %vm608 = vweird.f32 %v591
    %vm609 = vweird.f32 %v602
    %vm610 = vmor %vm608, %vm609
    %v611 = vsel %vm610, %v602, %v607
    %v612 = vmul.f32 %v580, %v601
    %v613 = vmul.f32 %v581, %v611
    %v615 = vperm.slane %v570, 0
    %v617 = vmul.f32 %v612, %v615
    %v618 = vmul.f32 %v613, %v615
    %v620 = vperm.slane %v571, 0
    %v622 = vadd.f32 %v617, %v620
    %v623 = vadd.f32 %v618, %v620
    %v624 = vpack.c.bf16 %v622, %v622
    %v625 = vpack.c.bf16 %v623, %v623
    %626 = vst [vmem:[#allocation13] sm:$0xf] %v624
    %627 = vst [vmem:[#allocation13 + $0x4] sm:$0xf] %v625
    // Predicated region
    $region82: #{tpu_custom_call.1} parent=1 // pred_check
      _
    $region83: #{tpu_custom_call.1} parent=1 // pred_check_branch
      %629 = sbr.rel (0) target = $region85
    $region84: #{tpu_custom_call.1} parent=1 // pred_region
      %631 = vsyncadd [#allocation4], 0
      %s632 = sshll.u32 [#allocation13], 4
      %s633 = int_to_ptr.vmem [resolvable:$true] %s632
      %s634 = sshll.u32 %s14, 4
      %s635 = int_to_ptr.hbm [resolvable:$true] %s634
      %640 = dma.vmem_to_hbm [thread:$0]  %s633, 128, %s635, [#allocation4], 64, 64, 4
    $region85: #{tpu_custom_call.1} parent=1 // pred_fallthru
      _
    // Predicated region
    $region86: #{tpu_custom_call.1} parent=1 // pred_check
      _
    $region87: #{tpu_custom_call.1} parent=1 // pred_check_branch
      %642 = sbr.rel (0) target = $region89
    $region88: #{tpu_custom_call.1} parent=1 // pred_region
      %644 = dma.done [#allocation4], 128
    $region89: #{tpu_custom_call.1} parent=1 // pred_fallthru
      _
    %645 = vsyncpa [#allocation3], 1
    %646 = vsyncpa [#allocation6], 1
    %647 = vsyncpa [#allocation9], 1
    %648 = vsyncpa [#allocation12], 1
    %649 = vsyncpa [#allocation4], 1

</llo_original>
